<compile_context>
chip_gen: v5e
topology: v5e:2x2
jax: 0.10.0
libtpu: 0.0.40
codegen_flags: <defaults>
</compile_context>

<pallas_src>
import jax
import jax.numpy as jnp
from jax.experimental import pallas as pl
from jax.experimental.pallas import tpu as pltpu

EPS = 1e-5          # InstanceNorm2d default eps
NEG_SLOPE = 0.01    # LeakyReLU slope


def _make_kernel(H, W, K, Cout_pad):
    HW = H * W
    pad = K // 2

    def kernel(x_ref, w_ref, o_ref):
        # x_ref: [1, Cin_pad, S2] bf16, S2 = (H + 2*pad)*W + 2*pad  (H-padded, flat, end-padded)
        # w_ref: [K*K, Cout_pad, Cin_pad] bf16 (tap-major)
        # o_ref: [1, Cout_pad, HW]
        xf = x_ref[0]                                              # [Cin_pad, S2]

        # w-coordinate of every flattened output position (for edge-tap masking).
        w_coord = jax.lax.broadcasted_iota(jnp.int32, (1, HW), 1) % W

        acc = jnp.zeros((Cout_pad, HW), jnp.float32)
        for dx in range(K):
            part = jnp.zeros((Cout_pad, HW), jnp.float32)
            for dy in range(K):
                start = dy * W + dx                                # static lane offset
                xs = xf[:, start:start + HW]                       # [Cin_pad, HW] bf16
                wt = w_ref[dy * K + dx]                            # [Cout_pad, Cin_pad] bf16
                part = part + jnp.dot(wt, xs,                      # MXU, f32 accumulate
                                      preferred_element_type=jnp.float32)
            off = dx - pad        # column offset of this tap (-1, 0, +1 for K=3)
            if off < 0:           # would read column w + off < 0  -> zero (SAME padding)
                part = jnp.where(w_coord >= -off, part, 0.0)
            elif off > 0:         # would read column w + off >= W -> zero
                part = jnp.where(w_coord < W - off, part, 0.0)
            acc = acc + part

        # InstanceNorm2d (affine=False): per-(n, channel) stats over HW, single pass.
        inv_hw = 1.0 / HW
        s1 = jnp.sum(acc, axis=1, keepdims=True)                   # [Cout_pad, 1]
        s2 = jnp.sum(acc * acc, axis=1, keepdims=True)             # [Cout_pad, 1]
        mean = s1 * inv_hw
        var = jnp.maximum(s2 * inv_hw - mean * mean, 0.0)
        yn = (acc - mean) * jax.lax.rsqrt(var + EPS)

        # LeakyReLU(0.01)
        out = jnp.where(yn >= 0, yn, NEG_SLOPE * yn)
        o_ref[0] = out.astype(o_ref.dtype)

    return kernel


def conv_norm_relu(x, weight, bias=None, *, kernel_size=3, padding="SAME"):
    """x: [N, Cin, H, W] f32; weight: [Cout, Cin, k, k]; bias accepted for interface parity.

    Note: the conv bias is NOT fed to the kernel — InstanceNorm's mean subtraction
    cancels any per-channel constant exactly, so it is mathematically a no-op.
    """
    del bias
    N, Cin, H, W = x.shape
    Cout = weight.shape[0]
    K = kernel_size
    assert padding == "SAME", "this kernel implements stride-1 SAME padding"
    p = K // 2
    HW = H * W

    Cin_pad = -(-Cin // 8) * 8     # sublane / contraction dim -> multiple of 8
    Cout_pad = -(-Cout // 8) * 8   # output sublane dim -> multiple of 8
    S2 = (H + 2 * p) * W + 2 * p

    # Pad channels, pad H by p rows (SAME), flatten spatial, pad flat axis by p each end.
    xh = jnp.pad(x, ((0, 0), (0, Cin_pad - Cin), (p, p), (0, 0)))
    xf = xh.reshape(N, Cin_pad, (H + 2 * p) * W)
    xf = jnp.pad(xf, ((0, 0), (0, 0), (p, p))).astype(jnp.bfloat16)       # [N, Cin_pad, S2]

    # Weights: [Cout, Cin, K, K] -> tap-major [K*K, Cout_pad, Cin_pad], bf16.
    wt = jnp.pad(weight, ((0, Cout_pad - Cout), (0, Cin_pad - Cin), (0, 0), (0, 0)))
    wt = wt.transpose(2, 3, 0, 1).reshape(K * K, Cout_pad, Cin_pad).astype(jnp.bfloat16)

    flops = 2 * N * HW * Cin * K * K * Cout
    bytes_accessed = (N * Cin_pad * S2 * 2 + K * K * Cout_pad * Cin_pad * 2
                      + N * Cout_pad * HW * 4)
    cost = pl.CostEstimate(flops=flops, transcendentals=N * Cout,
                           bytes_accessed=bytes_accessed)

    out = pl.pallas_call(
        _make_kernel(H, W, K, Cout_pad),
        out_shape=jax.ShapeDtypeStruct((N, Cout_pad, HW), x.dtype),
        grid_spec=pltpu.PrefetchScalarGridSpec(
            num_scalar_prefetch=0,
            grid=(N,),
            in_specs=[
                pl.BlockSpec((1, Cin_pad, S2), lambda n: (n, 0, 0)),
                pl.BlockSpec((K * K, Cout_pad, Cin_pad), lambda n: (0, 0, 0)),
            ],
            out_specs=pl.BlockSpec((1, Cout_pad, HW), lambda n: (n, 0, 0)),
        ),
        compiler_params=pltpu.CompilerParams(
            dimension_semantics=("parallel",),
            # Raise default scoped-VMEM limit (16 MiB v5e / 32 MiB v6e+), stay < v7x 64 MiB.
            vmem_limit_bytes=48 << 20,
        ),
        cost_estimate=cost,
    )(xf, wt)

    # [N, Cout_pad, HW] -> [N, Cout, H, W]: cheap channel slice + free reshape, no transpose.
    return out[:, :Cout, :].reshape(N, Cout, H, W)


def _reference(x, weight, bias):
    """Plain-JAX f32 reference (matches the PyTorch module's forward)."""
    y = jax.lax.conv_general_dilated(
        x, weight, window_strides=(1, 1), padding="SAME",
        dimension_numbers=("NCHW", "OIHW", "NCHW"),
        precision=jax.lax.Precision.HIGHEST)
    y = y + bias.reshape(1, -1, 1, 1)
    mean = jnp.mean(y, axis=(2, 3), keepdims=True)
    var = jnp.mean((y - mean) ** 2, axis=(2, 3), keepdims=True)
    yn = (y - mean) * jax.lax.rsqrt(var + EPS)
    return jnp.where(yn >= 0, yn, NEG_SLOPE * yn)


if __name__ == "__main__":
    key = jax.random.PRNGKey(0)
    k_x, k_w, k_b = jax.random.split(key, 3)

    N, Cin, H, W = 2, 4, 16, 16
    Cout, ksz = 8, 3

    x = jax.random.normal(k_x, (N, Cin, H, W), dtype=jnp.float32)
    fan_in = Cin * ksz * ksz
    weight = jax.random.normal(k_w, (Cout, Cin, ksz, ksz), dtype=jnp.float32) / jnp.sqrt(fan_in)
    bias = jax.random.normal(k_b, (Cout,), dtype=jnp.float32) * 0.1

    out = conv_norm_relu(x, weight, bias, kernel_size=ksz, padding="SAME")
    out = jax.block_until_ready(out)
    assert out.shape == (N, Cout, H, W)

    # Tight check: reference fed the same bf16-quantized conv operands (isolates kernel
    # math from the deliberate bf16 MXU cast). Bias included in the reference — it is
    # cancelled by InstanceNorm, which also validates dropping it in the kernel.
    xq = x.astype(jnp.bfloat16).astype(jnp.float32)
    wq = weight.astype(jnp.bfloat16).astype(jnp.float32)
    ref_q = _reference(xq, wq, bias)
    assert jnp.allclose(out, ref_q, atol=2e-3, rtol=2e-3), "mismatch vs bf16-quantized reference"

    # Loose sanity check vs the full-f32 PyTorch-equivalent reference.
    ref = _reference(x, weight, bias)
    assert jnp.allclose(out, ref, atol=6e-2, rtol=6e-2), "mismatch vs f32 reference"

    print("KERNEL_OK")
</pallas_src>

<mosaic_0001>
module attributes {stable_mosaic.version = 11 : i64} {
  func.func @kernel(%arg0: i32, %arg1: memref<1x8x290xbf16, #tpu.memory_space<vmem>>, %arg2: memref<9x8x8xbf16, #tpu.memory_space<vmem>>, %arg3: memref<1x8x256xf32, #tpu.memory_space<vmem>>) attributes {dimension_semantics = [#tpu.dimension_semantics<parallel>], iteration_bounds = array<i64: 2>, scalar_prefetch = 0 : i64, scratch_operands = 0 : i64, tpu.core_type = #tpu.core_type<tc>, window_params = [{transform_indices = @transform_0, window_bounds = array<i64: 1, 8, 290>}, {pipeline_mode = #tpu.pipeline_mode<synchronous>, transform_indices = @transform_1, window_bounds = array<i64: 9, 8, 8>}, {transform_indices = @transform_2, window_bounds = array<i64: 1, 8, 256>}]} {
    %c0 = arith.constant 0 : index
    %c0_0 = arith.constant 0 : index
    %c0_1 = arith.constant 0 : index
    %0 = vector.load %arg1[%c0, %c0_0, %c0_1] : memref<1x8x290xbf16, #tpu.memory_space<vmem>>, vector<1x8x290xbf16>
    %1 = vector.shape_cast %0 : vector<1x8x290xbf16> to vector<8x290xbf16>
    %2 = tpu.iota {dimensions = array<i32: 1>} : vector<1x256xi32>
    %c16_i32 = arith.constant 16 : i32
    %c0_i32 = arith.constant 0 : i32
    %3 = arith.cmpi eq, %c16_i32, %c0_i32 : i32
    %c1_i32 = arith.constant 1 : i32
    %4 = arith.select %3, %c1_i32, %c16_i32 : i32
    %5 = vector.broadcast %4 : i32 to vector<1x256xi32>
    %6 = arith.remsi %2, %5 : vector<1x256xi32>
    %c0_i32_2 = arith.constant 0 : i32
    %7 = vector.broadcast %c0_i32_2 : i32 to vector<1x256xi32>
    %8 = arith.cmpi ne, %6, %7 : vector<1x256xi32>
    %c0_i32_3 = arith.constant 0 : i32
    %9 = vector.broadcast %c0_i32_3 : i32 to vector<1x256xi32>
    %10 = arith.cmpi slt, %6, %9 : vector<1x256xi32>
    %c0_i32_4 = arith.constant 0 : i32
    %11 = arith.cmpi slt, %4, %c0_i32_4 : i32
    %12 = vector.broadcast %11 : i1 to vector<1x256xi1>
    %13 = vector.broadcast %12 : vector<1x256xi1> to vector<1x256xi1>
    %14 = arith.xori %10, %13 : vector<1x256xi1>
    %15 = arith.andi %14, %8 : vector<1x256xi1>
    %16 = vector.broadcast %4 : i32 to vector<1x256xi32>
    %17 = arith.addi %6, %16 : vector<1x256xi32>
    %18 = arith.select %15, %17, %6 : vector<1x256xi1>, vector<1x256xi32>
    %cst = arith.constant 0.000000e+00 : f32
    %19 = vector.broadcast %cst : f32 to vector<8x256xf32>
    %cst_5 = arith.constant 0.000000e+00 : f32
    %20 = vector.broadcast %cst_5 : f32 to vector<8x256xf32>
    %21 = vector.extract_strided_slice %1 {offsets = [0, 0], sizes = [8, 256], strides = [1, 1]} : vector<8x290xbf16> to vector<8x256xbf16>
    %c0_6 = arith.constant 0 : index
    %c0_7 = arith.constant 0 : index
    %c0_8 = arith.constant 0 : index
    %22 = vector.load %arg2[%c0_6, %c0_7, %c0_8] : memref<9x8x8xbf16, #tpu.memory_space<vmem>>, vector<1x8x8xbf16>
    %23 = vector.shape_cast %22 : vector<1x8x8xbf16> to vector<8x8xbf16>
    %cst_9 = arith.constant dense<0.000000e+00> : vector<8x256xf32>
    %24 = tpu.matmul %23, %21, %cst_9 {dimension_numbers = #tpu.dot_dimension_numbers<[1], [0], [0], [1], [0, 0, 1, 1], [], []>} : vector<8x8xbf16>, vector<8x256xbf16>, vector<8x256xf32> -> vector<8x256xf32>
    %25 = arith.addf %20, %24 : vector<8x256xf32>
    %26 = vector.extract_strided_slice %1 {offsets = [0, 16], sizes = [8, 256], strides = [1, 1]} : vector<8x290xbf16> to vector<8x256xbf16>
    %c3 = arith.constant 3 : index
    %c0_10 = arith.constant 0 : index
    %c0_11 = arith.constant 0 : index
    %27 = vector.load %arg2[%c3, %c0_10, %c0_11] : memref<9x8x8xbf16, #tpu.memory_space<vmem>>, vector<1x8x8xbf16>
    %28 = vector.shape_cast %27 : vector<1x8x8xbf16> to vector<8x8xbf16>
    %cst_12 = arith.constant dense<0.000000e+00> : vector<8x256xf32>
    %29 = tpu.matmul %28, %26, %cst_12 {dimension_numbers = #tpu.dot_dimension_numbers<[1], [0], [0], [1], [0, 0, 1, 1], [], []>} : vector<8x8xbf16>, vector<8x256xbf16>, vector<8x256xf32> -> vector<8x256xf32>
    %30 = arith.addf %25, %29 : vector<8x256xf32>
    %31 = vector.extract_strided_slice %1 {offsets = [0, 32], sizes = [8, 256], strides = [1, 1]} : vector<8x290xbf16> to vector<8x256xbf16>
    %c6 = arith.constant 6 : index
    %c0_13 = arith.constant 0 : index
    %c0_14 = arith.constant 0 : index
    %32 = vector.load %arg2[%c6, %c0_13, %c0_14] : memref<9x8x8xbf16, #tpu.memory_space<vmem>>, vector<1x8x8xbf16>
    %33 = vector.shape_cast %32 : vector<1x8x8xbf16> to vector<8x8xbf16>
    %cst_15 = arith.constant dense<0.000000e+00> : vector<8x256xf32>
    %34 = tpu.matmul %33, %31, %cst_15 {dimension_numbers = #tpu.dot_dimension_numbers<[1], [0], [0], [1], [0, 0, 1, 1], [], []>} : vector<8x8xbf16>, vector<8x256xbf16>, vector<8x256xf32> -> vector<8x256xf32>
    %35 = arith.addf %30, %34 : vector<8x256xf32>
    %c1_i32_16 = arith.constant 1 : i32
    %36 = vector.broadcast %c1_i32_16 : i32 to vector<1x256xi32>
    %37 = arith.cmpi sge, %18, %36 : vector<1x256xi32>
    %cst_17 = arith.constant 0.000000e+00 : f32
    %38 = vector.shape_cast %37 : vector<1x256xi1> to vector<1x256xi1>
    %39 = vector.broadcast %38 : vector<1x256xi1> to vector<8x256xi1>
    %40 = vector.broadcast %cst_17 : f32 to vector<8x256xf32>
    %41 = arith.select %39, %35, %40 : vector<8x256xi1>, vector<8x256xf32>
    %42 = arith.addf %19, %41 : vector<8x256xf32>
    %cst_18 = arith.constant 0.000000e+00 : f32
    %43 = vector.broadcast %cst_18 : f32 to vector<8x256xf32>
    %44 = vector.extract_strided_slice %1 {offsets = [0, 1], sizes = [8, 256], strides = [1, 1]} : vector<8x290xbf16> to vector<8x256xbf16>
    %c1 = arith.constant 1 : index
    %c0_19 = arith.constant 0 : index
    %c0_20 = arith.constant 0 : index
    %45 = vector.load %arg2[%c1, %c0_19, %c0_20] : memref<9x8x8xbf16, #tpu.memory_space<vmem>>, vector<1x8x8xbf16>
    %46 = vector.shape_cast %45 : vector<1x8x8xbf16> to vector<8x8xbf16>
    %cst_21 = arith.constant dense<0.000000e+00> : vector<8x256xf32>
    %47 = tpu.matmul %46, %44, %cst_21 {dimension_numbers = #tpu.dot_dimension_numbers<[1], [0], [0], [1], [0, 0, 1, 1], [], []>} : vector<8x8xbf16>, vector<8x256xbf16>, vector<8x256xf32> -> vector<8x256xf32>
    %48 = arith.addf %43, %47 : vector<8x256xf32>
    %49 = vector.extract_strided_slice %1 {offsets = [0, 17], sizes = [8, 256], strides = [1, 1]} : vector<8x290xbf16> to vector<8x256xbf16>
    %c4 = arith.constant 4 : index
    %c0_22 = arith.constant 0 : index
    %c0_23 = arith.constant 0 : index
    %50 = vector.load %arg2[%c4, %c0_22, %c0_23] : memref<9x8x8xbf16, #tpu.memory_space<vmem>>, vector<1x8x8xbf16>
    %51 = vector.shape_cast %50 : vector<1x8x8xbf16> to vector<8x8xbf16>
    %cst_24 = arith.constant dense<0.000000e+00> : vector<8x256xf32>
    %52 = tpu.matmul %51, %49, %cst_24 {dimension_numbers = #tpu.dot_dimension_numbers<[1], [0], [0], [1], [0, 0, 1, 1], [], []>} : vector<8x8xbf16>, vector<8x256xbf16>, vector<8x256xf32> -> vector<8x256xf32>
    %53 = arith.addf %48, %52 : vector<8x256xf32>
    %54 = vector.extract_strided_slice %1 {offsets = [0, 33], sizes = [8, 256], strides = [1, 1]} : vector<8x290xbf16> to vector<8x256xbf16>
    %c7 = arith.constant 7 : index
    %c0_25 = arith.constant 0 : index
    %c0_26 = arith.constant 0 : index
    %55 = vector.load %arg2[%c7, %c0_25, %c0_26] : memref<9x8x8xbf16, #tpu.memory_space<vmem>>, vector<1x8x8xbf16>
    %56 = vector.shape_cast %55 : vector<1x8x8xbf16> to vector<8x8xbf16>
    %cst_27 = arith.constant dense<0.000000e+00> : vector<8x256xf32>
    %57 = tpu.matmul %56, %54, %cst_27 {dimension_numbers = #tpu.dot_dimension_numbers<[1], [0], [0], [1], [0, 0, 1, 1], [], []>} : vector<8x8xbf16>, vector<8x256xbf16>, vector<8x256xf32> -> vector<8x256xf32>
    %58 = arith.addf %53, %57 : vector<8x256xf32>
    %59 = arith.addf %42, %58 : vector<8x256xf32>
    %cst_28 = arith.constant 0.000000e+00 : f32
    %60 = vector.broadcast %cst_28 : f32 to vector<8x256xf32>
    %61 = vector.extract_strided_slice %1 {offsets = [0, 2], sizes = [8, 256], strides = [1, 1]} : vector<8x290xbf16> to vector<8x256xbf16>
    %c2 = arith.constant 2 : index
    %c0_29 = arith.constant 0 : index
    %c0_30 = arith.constant 0 : index
    %62 = vector.load %arg2[%c2, %c0_29, %c0_30] : memref<9x8x8xbf16, #tpu.memory_space<vmem>>, vector<1x8x8xbf16>
    %63 = vector.shape_cast %62 : vector<1x8x8xbf16> to vector<8x8xbf16>
    %cst_31 = arith.constant dense<0.000000e+00> : vector<8x256xf32>
    %64 = tpu.matmul %63, %61, %cst_31 {dimension_numbers = #tpu.dot_dimension_numbers<[1], [0], [0], [1], [0, 0, 1, 1], [], []>} : vector<8x8xbf16>, vector<8x256xbf16>, vector<8x256xf32> -> vector<8x256xf32>
    %65 = arith.addf %60, %64 : vector<8x256xf32>
    %66 = vector.extract_strided_slice %1 {offsets = [0, 18], sizes = [8, 256], strides = [1, 1]} : vector<8x290xbf16> to vector<8x256xbf16>
    %c5 = arith.constant 5 : index
    %c0_32 = arith.constant 0 : index
    %c0_33 = arith.constant 0 : index
    %67 = vector.load %arg2[%c5, %c0_32, %c0_33] : memref<9x8x8xbf16, #tpu.memory_space<vmem>>, vector<1x8x8xbf16>
    %68 = vector.shape_cast %67 : vector<1x8x8xbf16> to vector<8x8xbf16>
    %cst_34 = arith.constant dense<0.000000e+00> : vector<8x256xf32>
    %69 = tpu.matmul %68, %66, %cst_34 {dimension_numbers = #tpu.dot_dimension_numbers<[1], [0], [0], [1], [0, 0, 1, 1], [], []>} : vector<8x8xbf16>, vector<8x256xbf16>, vector<8x256xf32> -> vector<8x256xf32>
    %70 = arith.addf %65, %69 : vector<8x256xf32>
    %71 = vector.extract_strided_slice %1 {offsets = [0, 34], sizes = [8, 256], strides = [1, 1]} : vector<8x290xbf16> to vector<8x256xbf16>
    %c8 = arith.constant 8 : index
    %c0_35 = arith.constant 0 : index
    %c0_36 = arith.constant 0 : index
    %72 = vector.load %arg2[%c8, %c0_35, %c0_36] : memref<9x8x8xbf16, #tpu.memory_space<vmem>>, vector<1x8x8xbf16>
    %73 = vector.shape_cast %72 : vector<1x8x8xbf16> to vector<8x8xbf16>
    %cst_37 = arith.constant dense<0.000000e+00> : vector<8x256xf32>
    %74 = tpu.matmul %73, %71, %cst_37 {dimension_numbers = #tpu.dot_dimension_numbers<[1], [0], [0], [1], [0, 0, 1, 1], [], []>} : vector<8x8xbf16>, vector<8x256xbf16>, vector<8x256xf32> -> vector<8x256xf32>
    %75 = arith.addf %70, %74 : vector<8x256xf32>
    %c15_i32 = arith.constant 15 : i32
    %76 = vector.broadcast %c15_i32 : i32 to vector<1x256xi32>
    %77 = arith.cmpi slt, %18, %76 : vector<1x256xi32>
    %cst_38 = arith.constant 0.000000e+00 : f32
    %78 = vector.shape_cast %77 : vector<1x256xi1> to vector<1x256xi1>
    %79 = vector.broadcast %78 : vector<1x256xi1> to vector<8x256xi1>
    %80 = vector.broadcast %cst_38 : f32 to vector<8x256xf32>
    %81 = arith.select %79, %75, %80 : vector<8x256xi1>, vector<8x256xf32>
    %82 = arith.addf %59, %81 : vector<8x256xf32>
    %cst_39 = arith.constant dense<0.000000e+00> : vector<8xf32>
    %83 = vector.multi_reduction <add>, %82, %cst_39 [1] : vector<8x256xf32> to vector<8xf32>
    %84 = vector.shape_cast %83 : vector<8xf32> to vector<8x1xf32>
    %85 = arith.mulf %82, %82 : vector<8x256xf32>
    %cst_40 = arith.constant dense<0.000000e+00> : vector<8xf32>
    %86 = vector.multi_reduction <add>, %85, %cst_40 [1] : vector<8x256xf32> to vector<8xf32>
    %87 = vector.shape_cast %86 : vector<8xf32> to vector<8x1xf32>
    %cst_41 = arith.constant 3.906250e-03 : f32
    %88 = vector.broadcast %cst_41 : f32 to vector<8x1xf32>
    %89 = arith.mulf %84, %88 : vector<8x1xf32>
    %cst_42 = arith.constant 3.906250e-03 : f32
    %90 = vector.broadcast %cst_42 : f32 to vector<8x1xf32>
    %91 = arith.mulf %87, %90 : vector<8x1xf32>
    %92 = arith.mulf %89, %89 : vector<8x1xf32>
    %93 = arith.subf %91, %92 : vector<8x1xf32>
    %cst_43 = arith.constant 0.000000e+00 : f32
    %94 = vector.broadcast %cst_43 : f32 to vector<8x1xf32>
    %95 = arith.maximumf %93, %94 : vector<8x1xf32>
    %96 = vector.broadcast %89 : vector<8x1xf32> to vector<8x256xf32>
    %97 = arith.subf %82, %96 : vector<8x256xf32>
    %cst_44 = arith.constant 9.99999974E-6 : f32
    %98 = vector.broadcast %cst_44 : f32 to vector<8x1xf32>
    %99 = arith.addf %95, %98 : vector<8x1xf32>
    %100 = math.rsqrt %99 : vector<8x1xf32>
    %101 = vector.broadcast %100 : vector<8x1xf32> to vector<8x256xf32>
    %102 = arith.mulf %97, %101 : vector<8x256xf32>
    %cst_45 = arith.constant 0.000000e+00 : f32
    %103 = vector.broadcast %cst_45 : f32 to vector<8x256xf32>
    %104 = arith.cmpf oge, %102, %103 : vector<8x256xf32>
    %cst_46 = arith.constant 0.00999999977 : f32
    %105 = vector.broadcast %cst_46 : f32 to vector<8x256xf32>
    %106 = arith.mulf %105, %102 : vector<8x256xf32>
    %107 = arith.select %104, %102, %106 : vector<8x256xi1>, vector<8x256xf32>
    %c0_47 = arith.constant 0 : index
    %c0_48 = arith.constant 0 : index
    %c0_49 = arith.constant 0 : index
    %108 = vector.load %arg3[%c0_47, %c0_48, %c0_49] : memref<1x8x256xf32, #tpu.memory_space<vmem>>, vector<1x8x256xf32>
    %109 = vector.shape_cast %108 : vector<1x8x256xf32> to vector<8x256xf32>
    %110 = vector.shape_cast %107 : vector<8x256xf32> to vector<1x8x256xf32>
    tpu.vector_store %arg3[%c0_47, %c0_48, %c0_49], %110 {strides = array<i32>} : memref<1x8x256xf32, #tpu.memory_space<vmem>>, vector<1x8x256xf32>,
    return
  }
  func.func @transform_0(%arg0: i32) -> (i32, i32, i32) {
    %c0_i32 = arith.constant 0 : i32
    %c0_i32_0 = arith.constant 0 : i32
    %c0_i32_1 = arith.constant 0 : i32
    return %arg0, %c0_i32, %c0_i32_0 : i32, i32, i32
  }
  func.func @transform_1(%arg0: i32) -> (i32, i32, i32) {
    %c0_i32 = arith.constant 0 : i32
    %c0_i32_0 = arith.constant 0 : i32
    %c0_i32_1 = arith.constant 0 : i32
    %c0_i32_2 = arith.constant 0 : i32
    return %c0_i32, %c0_i32_0, %c0_i32_1 : i32, i32, i32
  }
  func.func @transform_2(%arg0: i32) -> (i32, i32, i32) {
    %c0_i32 = arith.constant 0 : i32
    %c0_i32_0 = arith.constant 0 : i32
    %c0_i32_1 = arith.constant 0 : i32
    return %arg0, %c0_i32, %c0_i32_0 : i32, i32, i32
  }
}

</mosaic_0001>

<llo_original>
// kernel: tpu_custom_call.1
$region0: #{tpu_custom_call.1}
  #allocation0 [shape = 'u32[]', space=smem, size = 0x4, offset = 0x4, fixed_abs, tag = 'smem constant byte address 0x4 - core index']
  #allocation1 [shape = 'u32[72,128]{1,0:T(1,128)}', space=vmem, size = 0x9000, scoped, tag = 'internal scratch']
  %s0 = inlined_call_operand.vmem [shape: bf16[2,8,290], index: 0, kind: input, shape index: {}]
  %s1 = inlined_call_operand.vmem [shape: bf16[9,8,8], index: 1, kind: input, shape index: {}]
  %s2 = inlined_call_operand.hbm [shape: f32[2,8,256], index: 2, kind: output, shape index: {}]
  %s3 = sld [smem:[#allocation0]]
  $region41: #{tpu_custom_call.1} parent=0
    _
  %s5 = ssub.s32 1, %s3
  %s6 = scalar_select 0, %s5, %s3
  $region1: #{tpu_custom_call.1} parent=0
    #allocation2 [shape = 'u8[16384]{0}', space=vmem, size = 0x4000, scoped, tag = 'output window, operand 0']
    #allocation3 [shape = 's32[2]{0}', space=sflag, size = 0x8, scoped, tag = 'scoped memory for tpu_custom_call.1']
    %7 = vsyncpa [#allocation3], 0
    %s8 = scalar_lea.sflag [#allocation3], 1
    %9 = vsyncpa %s8, 0
    loop: start=0, step=1, limit=4
    $region2: #{tpu_custom_call.1} parent=1 // loop_pre_header
      _
    $region3: #{tpu_custom_call.1} parent=1 // loop_header
      %s11 = sphi 0, %s15
      %p12 = scmp.ge.s32.totalorder %s11, 4
      %s21 = sphi 0, %s23
      %s24 = sphi 0, %s21
      %s25 = sphi 0, %s24
      %s41 = sphi 0, %s25
      %s45 = sphi 0, %s45
      %s47 = sphi 0, %s45
      %s48 = sphi 0, %s47
      %s62 = sphi 0, %s48
      %s68 = sphi 0, %s70
      %s71 = sphi 0, %s68
      %s72 = sphi 0, %s71
      %s88 = sphi 0, %s72
    $region4: #{tpu_custom_call.1} parent=1 // loop_header_branch
      %14 = sbr.rel (%p12) target = $region8
    $region5: #{tpu_custom_call.1} parent=1 // loop_body
      %s16 = ssub.s32 %s11, 1
      %s17 = ssub.s32 %s11, 2
      %s18 = sadd.s32 %s11, 1
      %s19 = ssub.s32 %s11, %s18
      %p20 = scmp.eq.s32.totalorder %s19, 0
      %s22 = sadd.s32 %s21, 1
      %s23 = scalar_select %p20, %s21, %s22
      %p26 = pneg %p20
      %p27 = scmp.eq.s32.totalorder %s11, 1
      %p28 = por %p26, %p27
      %p29 = scmp.ne.s32.totalorder %s21, %s24
      %p30 = scmp.eq.s32.totalorder %s11, 0
      %p31 = por %p29, %p30
      %p32 = scmp.ne.s32.totalorder %s21, %s24
      %p33 = scmp.eq.s32.totalorder %s16, 1
      %p34 = por %p32, %p33
      %p35 = scmp.ne.s32.totalorder %s24, %s25
      %p36 = scmp.eq.s32.totalorder %s16, 0
      %p37 = por %p35, %p36
      %p38 = scmp.ne.s32.totalorder %s24, %s25
      %p39 = scmp.eq.s32.totalorder %s17, 1
      %p40 = por %p38, %p39
      %p42 = scmp.ne.s32.totalorder %s25, %s41
      %p43 = scmp.eq.s32.totalorder %s17, 0
      %p44 = por %p42, %p43
      %s46 = sadd.s32 %s45, 1
      %p49 = scmp.eq.s32.totalorder %s11, 1
      %p50 = scmp.ne.s32.totalorder %s45, %s47
      %p51 = scmp.eq.s32.totalorder %s11, 0
      %p52 = por %p50, %p51
      %p53 = scmp.ne.s32.totalorder %s45, %s47
      %p54 = scmp.eq.s32.totalorder %s16, 1
      %p55 = por %p53, %p54
      %p56 = scmp.ne.s32.totalorder %s47, %s48
      %p57 = scmp.eq.s32.totalorder %s16, 0
      %p58 = por %p56, %p57
      %p59 = scmp.ne.s32.totalorder %s47, %s48
      %p60 = scmp.eq.s32.totalorder %s17, 1
      %p61 = por %p59, %p60
      %p63 = scmp.ne.s32.totalorder %s48, %s62
      %p64 = scmp.eq.s32.totalorder %s17, 0
      %p65 = por %p63, %p64
      %s66 = ssub.s32 %s11, %s18
      %p67 = scmp.eq.s32.totalorder %s66, 0
      %s69 = sadd.s32 %s68, 1
      %s70 = scalar_select %p67, %s68, %s69
      %p73 = pneg %p67
      %p74 = scmp.eq.s32.totalorder %s11, 1
      %p75 = por %p73, %p74
      %p76 = scmp.ne.s32.totalorder %s68, %s71
      %p77 = scmp.eq.s32.totalorder %s11, 0
      %p78 = por %p76, %p77
      %p79 = scmp.ne.s32.totalorder %s68, %s71
      %p80 = scmp.eq.s32.totalorder %s16, 1
      %p81 = por %p79, %p80
      %p82 = scmp.ne.s32.totalorder %s71, %s72
      %p83 = scmp.eq.s32.totalorder %s16, 0
      %p84 = por %p82, %p83
      %p85 = scmp.ne.s32.totalorder %s71, %s72
      %p86 = scmp.eq.s32.totalorder %s17, 1
      %p87 = por %p85, %p86
      %p89 = scmp.ne.s32.totalorder %s72, %s88
      %p90 = scmp.eq.s32.totalorder %s17, 0
      %p91 = por %p89, %p90
      %p92 = scmp.le.s32.totalorder 1, %s11
      %p93 = scmp.lt.s32.totalorder %s11, 3
      %p94 = pnand %p92, %p93
      %p95 = pneg %p94
      // Predicated region
      $region9: #{tpu_custom_call.1} parent=5 // pred_check
        _
      $region10: #{tpu_custom_call.1} parent=5 // pred_check_branch
        %97 = sbr.rel (%p94) target = $region12
      $region11: #{tpu_custom_call.1} parent=5 // pred_region
        %s98 = ssub.s32 %s11, 1
        // Predicated region
        $region13: #{tpu_custom_call.1} parent=11 // pred_check
          %p99 = pneg %p58
        $region14: #{tpu_custom_call.1} parent=11 // pred_check_branch
          %101 = sbr.rel (%p99) target = $region16
        $region15: #{tpu_custom_call.1} parent=11 // pred_region
          _
        $region16: #{tpu_custom_call.1} parent=11 // pred_fallthru
          _
      $region12: #{tpu_custom_call.1} parent=5 // pred_fallthru
        _
      %p102 = scmp.lt.s32.totalorder %s11, 2
      // Predicated region
      $region17: #{tpu_custom_call.1} parent=5 // pred_check
        %p103 = pneg %p102
      $region18: #{tpu_custom_call.1} parent=5 // pred_check_branch
        %105 = sbr.rel (%p103) target = $region20
      $region19: #{tpu_custom_call.1} parent=5 // pred_region
        // Predicated region
        $region21: #{tpu_custom_call.1} parent=19 // pred_check
          %p106 = pneg %p31
        $region22: #{tpu_custom_call.1} parent=19 // pred_check_branch
          %108 = sbr.rel (%p106) target = $region24
        $region23: #{tpu_custom_call.1} parent=19 // pred_region
          %p109 = scmp.lt.s32.totalorder %s11, 1
          %s110 = scalar_select %p109, %s11, 1
          %s111 = smul.addr %s110, 3
          %s112 = smul.addr %s111, 4
          %s113 = scalar_lea.vmem %s0, %s112
        $region24: #{tpu_custom_call.1} parent=19 // pred_fallthru
          _
      $region20: #{tpu_custom_call.1} parent=5 // pred_fallthru
        _
      %p114 = scmp.le.s32.totalorder 1, %s11
      %p115 = scmp.lt.s32.totalorder %s11, 3
      %p116 = pnand %p114, %p115
      %p117 = pneg %p116
      // Predicated region
      $region25: #{tpu_custom_call.1} parent=5 // pred_check
        _
      $region26: #{tpu_custom_call.1} parent=5 // pred_check_branch
        %119 = sbr.rel (%p116) target = $region28
      $region27: #{tpu_custom_call.1} parent=5 // pred_region
        %s120 = ssub.s32 %s11, 1
        %p121 = scmp.lt.s32.totalorder %s16, 1
        %s122 = scalar_select %p121, %s16, 1
        %s123 = smul.addr %s122, 3
        %s124 = smul.addr %s123, 4
        %s125 = scalar_lea.vmem %s0, %s124
        %p126 = pneg %p37
        %p127 = pneg %p34
        %p128 = pneg %p58
        %p129 = pneg %p55
        %p130 = pneg %p84
        %p131 = pneg %p81
        %s132 = sand.u32 %s71, 1
        %s133 = scalar_lea.sflag [#allocation3], %s132
        %s134 = sand.u32 %s71, 1
        %s135 = smul.addr %s134, 16
        %s136 = scalar_lea.vmem [#allocation2], %s135
        %p137 = scmp.lt.s32.totalorder %s16, 1
        %s138 = scalar_select %p137, %s16, 1
        %s139 = smul.addr %s138, 3
        %s140 = smul.addr %s139, 4
        %s141 = scalar_lea.vmem %s0, %s140
        %v143 = vld [vmem:[%s141] sm:$0xff]
        %v144 = vld [vmem:[%s141 + $0x8] sm:$0xf]
        %v145 = vlaneseq
        %v146 = vand.u32 %v145, 127
        %v147 = vadd.s32 %v146, 128
        %vm148 = vcmp.lt.s32.totalorder %v146, 0
        %v149 = vsub.s32 0, %v146
        %v150 = vsel %vm148, %v149, %v146
        %v151 = vshrl.u32 %v150, 4
        %v152 = vand.u32 %v150, 15
        %v153 = vsub.s32 0, %v152
        %v154 = vsel %vm148, %v153, %v152
        %vm155 = vcmp.lt.s32.totalorder %v147, 0
        %v156 = vsub.s32 0, %v147
        %v157 = vsel %vm155, %v156, %v147
        %v158 = vshrl.u32 %v157, 4
        %v159 = vand.u32 %v157, 15
        %v160 = vsub.s32 0, %v159
        %v161 = vsel %vm155, %v160, %v159
        %vm162 = vcmp.ne.s32.totalorder %v154, 0
        %vm163 = vcmp.ne.s32.totalorder %v161, 0
        %vm164 = vcmp.lt.s32.totalorder %v154, 0
        %vm165 = vcmp.lt.s32.totalorder %v161, 0
        %vm166 = vmand %vm164, %vm162
        %vm167 = vmand %vm165, %vm163
        %v168 = vadd.s32 %v154, 16
        %v169 = vadd.s32 %v161, 16
        %v170 = vsel %vm166, %v168, %v154
        %v171 = vsel %vm167, %v169, %v161
        %v172 = vld [vmem:[%s1] sm:$0xf]
        %s173 = scalar_lea.vmem %s1, 12
        %v174 = vld [vmem:[%s173] sm:$0xf]
        %v177 = vunpack.c.l.b16 %v143
        %v178 = vunpack.c.h.b16 %v143
        %v179 = vunpack.c.l.b16 %v144
        %v180 = vpack.c.b16 %v177, %v177
        %v181 = vpack.c.b16 %v178, %v178
        %v182 = vpack.c.b16 %v179, %v179
        %183 = vrot.lane.b32.xlu0 %v180, 112
        %v184 = vpop.permute.xlu0 %183
        %185 = vrot.lane.b32.xlu0 %v181, 112
        %v186 = vpop.permute.xlu0 %185
        %187 = vrot.lane.b32.xlu0 %v182, 112
        %v188 = vpop.permute.xlu0 %187
        %vm189 = vcmask 916480
        %v190 = vsel %vm189, %v184, %v186
        %v191 = vsel %vm189, %v186, %v188
        %vm192 = vcmask 64512
        %v194 = vsel %vm192, %v174, 0
        %vm196 = vcmask 1043456
        %v198 = vsel %vm196, %v190, 0
        %v201 = vsel %vm196, %v191, 0
        %203 = vmatpush.bf16.msra.mxu0 0
        %204 = vmatpush.bf16.msra.mxu0 0
        %205 = vmatpush.bf16.msra.mxu0 0
        %206 = vmatpush.bf16.msra.mxu0 0
        %207 = vmatpush.bf16.msra.mxu0 0
        %208 = vmatpush.bf16.msra.mxu0 0
        %209 = vmatpush.bf16.msra.mxu0 0
        %210 = vmatpush.bf16.msra.mxu0 %v198
        %211 = vmatmul.bf16.gmra.mxu0 %v194
        %v212 = vpop.f32.mrf.mxu0
        %v213 = vadd.f32 0.0, %v212
        %v214 = vpop.f32.mrf.mxu0
        %215 = vdwg.mxu0
        %216 = vmatpush.bf16.msra.mxu0 0
        %217 = vmatpush.bf16.msra.mxu0 0
        %218 = vmatpush.bf16.msra.mxu0 0
        %219 = vmatpush.bf16.msra.mxu0 0
        %220 = vmatpush.bf16.msra.mxu0 0
        %221 = vmatpush.bf16.msra.mxu0 0
        %222 = vmatpush.bf16.msra.mxu0 0
        %223 = vmatpush.bf16.msra.mxu0 %v201
        %224 = vmatmul.bf16.gmra.mxu0 %v194
        %v225 = vpop.f32.mrf.mxu0
        %v226 = vadd.f32 0.0, %v225
        %v227 = vpop.f32.mrf.mxu0
        %228 = vdwg.mxu0
        %v230 = vsel %vm192, %v172, 0
        %v233 = vsel %vm196, %v180, 0
        %v236 = vsel %vm196, %v181, 0
        %238 = vmatpush.bf16.msra.mxu0 0
        %239 = vmatpush.bf16.msra.mxu0 0
        %240 = vmatpush.bf16.msra.mxu0 0
        %241 = vmatpush.bf16.msra.mxu0 0
        %242 = vmatpush.bf16.msra.mxu0 0
        %243 = vmatpush.bf16.msra.mxu0 0
        %244 = vmatpush.bf16.msra.mxu0 0
        %245 = vmatpush.bf16.msra.mxu0 %v233
        %246 = vmatmul.bf16.gmra.mxu0 %v230
        %v247 = vpop.f32.mrf.mxu0
        %v248 = vadd.f32 %v213, %v247
        %v249 = vpop.f32.mrf.mxu0
        %250 = vdwg.mxu0
        %251 = vmatpush.bf16.msra.mxu0 0
        %252 = vmatpush.bf16.msra.mxu0 0
        %253 = vmatpush.bf16.msra.mxu0 0
        %254 = vmatpush.bf16.msra.mxu0 0
        %255 = vmatpush.bf16.msra.mxu0 0
        %256 = vmatpush.bf16.msra.mxu0 0
        %257 = vmatpush.bf16.msra.mxu0 0
        %258 = vmatpush.bf16.msra.mxu0 %v236
        %259 = vmatmul.bf16.gmra.mxu0 %v230
        %v260 = vpop.f32.mrf.mxu0
        %v261 = vadd.f32 %v226, %v260
        %v262 = vpop.f32.mrf.mxu0
        %263 = vdwg.mxu0
        %s264 = scalar_lea.vmem %s1, 24
        %v265 = vld [vmem:[%s264] sm:$0xf]
        %266 = vrot.lane.b32.xlu0 %v180, 96
        %v267 = vpop.permute.xlu0 %266
        %268 = vrot.lane.b32.xlu0 %v181, 96
        %v269 = vpop.permute.xlu0 %268
        %270 = vrot.lane.b32.xlu0 %v182, 96
        %v271 = vpop.permute.xlu0 %270
        %vm272 = vcmask 785408
        %v273 = vsel %vm272, %v267, %v269
        %v274 = vsel %vm272, %v269, %v271
        %v276 = vsel %vm192, %v265, 0
        %v279 = vsel %vm196, %v273, 0
        %v282 = vsel %vm196, %v274, 0
        %284 = vmatpush.bf16.msra.mxu0 0
        %285 = vmatpush.bf16.msra.mxu0 0
        %286 = vmatpush.bf16.msra.mxu0 0
        %287 = vmatpush.bf16.msra.mxu0 0
        %288 = vmatpush.bf16.msra.mxu0 0
        %289 = vmatpush.bf16.msra.mxu0 0
        %290 = vmatpush.bf16.msra.mxu0 0
        %291 = vmatpush.bf16.msra.mxu0 %v279
        %292 = vmatmul.bf16.gmra.mxu0 %v276
        %v293 = vpop.f32.mrf.mxu0
        %v294 = vadd.f32 0.0, %v293
        %v295 = vpop.f32.mrf.mxu0
        %296 = vdwg.mxu0
        %297 = vmatpush.bf16.msra.mxu0 0
        %298 = vmatpush.bf16.msra.mxu0 0
        %299 = vmatpush.bf16.msra.mxu0 0
        %300 = vmatpush.bf16.msra.mxu0 0
        %301 = vmatpush.bf16.msra.mxu0 0
        %302 = vmatpush.bf16.msra.mxu0 0
        %303 = vmatpush.bf16.msra.mxu0 0
        %304 = vmatpush.bf16.msra.mxu0 %v282
        %305 = vmatmul.bf16.gmra.mxu0 %v276
        %v306 = vpop.f32.mrf.mxu0
        %v307 = vadd.f32 0.0, %v306
        %v308 = vpop.f32.mrf.mxu0
        %309 = vdwg.mxu0
        %v310 = vadd.f32 %v248, %v294
        %v311 = vadd.f32 %v261, %v307
        %vm312 = vcmp.ge.s32.totalorder %v170, 1
        %vm313 = vcmp.ge.s32.totalorder %v171, 1
        %v314 = vsel %vm312, 1, 0
        %v315 = vsel %vm313, 1, 0
        %vm316 = vcmp.eq.s32.totalorder %v314, 1
        %vm317 = vcmp.eq.s32.totalorder %v315, 1
        %v318 = vsel %vm316, %v310, 0.0
        %v319 = vsel %vm317, %v311, 0.0
        %v320 = vadd.f32 %v318, 0.0
        %v321 = vadd.f32 %v319, 0.0
        %s322 = scalar_lea.vmem %s1, 4
        %v323 = vld [vmem:[%s322] sm:$0xf]
        %s324 = scalar_lea.vmem %s1, 16
        %v325 = vld [vmem:[%s324] sm:$0xf]
        %326 = vrot.lane.b32.xlu0 %v180, 111
        %v327 = vpop.permute.xlu0 %326
        %328 = vrot.lane.b32.xlu0 %v181, 111
        %v329 = vpop.permute.xlu0 %328
        %330 = vrot.lane.b32.xlu0 %v182, 111
        %v331 = vpop.permute.xlu0 %330
        %vm332 = vcmask 908288
        %v333 = vsel %vm332, %v327, %v329
        %v334 = vsel %vm332, %v329, %v331
        %v336 = vsel %vm192, %v325, 0
        %v339 = vsel %vm196, %v333, 0
        %v342 = vsel %vm196, %v334, 0
        %344 = vmatpush.bf16.msra.mxu0 0
        %345 = vmatpush.bf16.msra.mxu0 0
        %346 = vmatpush.bf16.msra.mxu0 0
        %347 = vmatpush.bf16.msra.mxu0 0
        %348 = vmatpush.bf16.msra.mxu0 0
        %349 = vmatpush.bf16.msra.mxu0 0
        %350 = vmatpush.bf16.msra.mxu0 0
        %351 = vmatpush.bf16.msra.mxu0 %v339
        %352 = vmatmul.bf16.gmra.mxu0 %v336
        %v353 = vpop.f32.mrf.mxu0
        %v354 = vadd.f32 0.0, %v353
        %v355 = vpop.f32.mrf.mxu0
        %356 = vdwg.mxu0
        %357 = vmatpush.bf16.msra.mxu0 0
        %358 = vmatpush.bf16.msra.mxu0 0
        %359 = vmatpush.bf16.msra.mxu0 0
        %360 = vmatpush.bf16.msra.mxu0 0
        %361 = vmatpush.bf16.msra.mxu0 0
        %362 = vmatpush.bf16.msra.mxu0 0
        %363 = vmatpush.bf16.msra.mxu0 0
        %364 = vmatpush.bf16.msra.mxu0 %v342
        %365 = vmatmul.bf16.gmra.mxu0 %v336
        %v366 = vpop.f32.mrf.mxu0
        %v367 = vadd.f32 0.0, %v366
        %v368 = vpop.f32.mrf.mxu0
        %369 = vdwg.mxu0
        %370 = vrot.lane.b32.xlu0 %v180, 127
        %v371 = vpop.permute.xlu0 %370
        %372 = vrot.lane.b32.xlu0 %v181, 127
        %v373 = vpop.permute.xlu0 %372
        %374 = vrot.lane.b32.xlu0 %v182, 127
        %v375 = vpop.permute.xlu0 %374
        %vm376 = vcmask 1039360
        %v377 = vsel %vm376, %v371, %v373
        %v378 = vsel %vm376, %v373, %v375
        %v380 = vsel %vm192, %v323, 0
        %v383 = vsel %vm196, %v377, 0
        %v386 = vsel %vm196, %v378, 0
        %388 = vmatpush.bf16.msra.mxu0 0
        %389 = vmatpush.bf16.msra.mxu0 0
        %390 = vmatpush.bf16.msra.mxu0 0
        %391 = vmatpush.bf16.msra.mxu0 0
        %392 = vmatpush.bf16.msra.mxu0 0
        %393 = vmatpush.bf16.msra.mxu0 0
        %394 = vmatpush.bf16.msra.mxu0 0
        %395 = vmatpush.bf16.msra.mxu0 %v383
        %396 = vmatmul.bf16.gmra.mxu0 %v380
        %v397 = vpop.f32.mrf.mxu0
        %v398 = vadd.f32 %v354, %v397
        %v399 = vpop.f32.mrf.mxu0
        %400 = vdwg.mxu0
        %401 = vmatpush.bf16.msra.mxu0 0
        %402 = vmatpush.bf16.msra.mxu0 0
        %403 = vmatpush.bf16.msra.mxu0 0
        %404 = vmatpush.bf16.msra.mxu0 0
        %405 = vmatpush.bf16.msra.mxu0 0
        %406 = vmatpush.bf16.msra.mxu0 0
        %407 = vmatpush.bf16.msra.mxu0 0
        %408 = vmatpush.bf16.msra.mxu0 %v386
        %409 = vmatmul.bf16.gmra.mxu0 %v380
        %v410 = vpop.f32.mrf.mxu0
        %v411 = vadd.f32 %v367, %v410
        %v412 = vpop.f32.mrf.mxu0
        %413 = vdwg.mxu0
        %s414 = scalar_lea.vmem %s1, 28
        %v415 = vld [vmem:[%s414] sm:$0xf]
        %416 = vrot.lane.b32.xlu0 %v180, 95
        %v417 = vpop.permute.xlu0 %416
        %418 = vrot.lane.b32.xlu0 %v181, 95
        %v419 = vpop.permute.xlu0 %418
        %420 = vrot.lane.b32.xlu0 %v182, 95
        %v421 = vpop.permute.xlu0 %420
        %vm422 = vcmask 777216
        %v423 = vsel %vm422, %v417, %v419
        %v424 = vsel %vm422, %v419, %v421
        %v426 = vsel %vm192, %v415, 0
        %v429 = vsel %vm196, %v423, 0
        %v432 = vsel %vm196, %v424, 0
        %434 = vmatpush.bf16.msra.mxu0 0
        %435 = vmatpush.bf16.msra.mxu0 0
        %436 = vmatpush.bf16.msra.mxu0 0
        %437 = vmatpush.bf16.msra.mxu0 0
        %438 = vmatpush.bf16.msra.mxu0 0
        %439 = vmatpush.bf16.msra.mxu0 0
        %440 = vmatpush.bf16.msra.mxu0 0
        %441 = vmatpush.bf16.msra.mxu0 %v429
        %442 = vmatmul.bf16.gmra.mxu0 %v426
        %v443 = vpop.f32.mrf.mxu0
        %v444 = vadd.f32 0.0, %v443
        %v445 = vpop.f32.mrf.mxu0
        %446 = vdwg.mxu0
        %447 = vmatpush.bf16.msra.mxu0 0
        %448 = vmatpush.bf16.msra.mxu0 0
        %449 = vmatpush.bf16.msra.mxu0 0
        %450 = vmatpush.bf16.msra.mxu0 0
        %451 = vmatpush.bf16.msra.mxu0 0
        %452 = vmatpush.bf16.msra.mxu0 0
        %453 = vmatpush.bf16.msra.mxu0 0
        %454 = vmatpush.bf16.msra.mxu0 %v432
        %455 = vmatmul.bf16.gmra.mxu0 %v426
        %v456 = vpop.f32.mrf.mxu0
        %v457 = vadd.f32 0.0, %v456
        %v458 = vpop.f32.mrf.mxu0
        %459 = vdwg.mxu0
        %v460 = vadd.f32 %v398, %v444
        %v461 = vadd.f32 %v411, %v457
        %v462 = vadd.f32 %v320, %v460
        %v463 = vadd.f32 %v321, %v461
        %s464 = scalar_lea.vmem %s1, 8
        %v465 = vld [vmem:[%s464] sm:$0xf]
        %s466 = scalar_lea.vmem %s1, 20
        %v467 = vld [vmem:[%s466] sm:$0xf]
        %468 = vrot.lane.b32.xlu0 %v180, 110
        %v469 = vpop.permute.xlu0 %468
        %470 = vrot.lane.b32.xlu0 %v181, 110
        %v471 = vpop.permute.xlu0 %470
        %472 = vrot.lane.b32.xlu0 %v182, 110
        %v473 = vpop.permute.xlu0 %472
        %vm474 = vcmask 900096
        %v475 = vsel %vm474, %v469, %v471
        %v476 = vsel %vm474, %v471, %v473
        %v478 = vsel %vm192, %v467, 0
        %v481 = vsel %vm196, %v475, 0
        %v484 = vsel %vm196, %v476, 0
        %486 = vmatpush.bf16.msra.mxu0 0
        %487 = vmatpush.bf16.msra.mxu0 0
        %488 = vmatpush.bf16.msra.mxu0 0
        %489 = vmatpush.bf16.msra.mxu0 0
        %490 = vmatpush.bf16.msra.mxu0 0
        %491 = vmatpush.bf16.msra.mxu0 0
        %492 = vmatpush.bf16.msra.mxu0 0
        %493 = vmatpush.bf16.msra.mxu0 %v481
        %494 = vmatmul.bf16.gmra.mxu0 %v478
        %v495 = vpop.f32.mrf.mxu0
        %v496 = vadd.f32 0.0, %v495
        %v497 = vpop.f32.mrf.mxu0
        %498 = vdwg.mxu0
        %499 = vmatpush.bf16.msra.mxu0 0
        %500 = vmatpush.bf16.msra.mxu0 0
        %501 = vmatpush.bf16.msra.mxu0 0
        %502 = vmatpush.bf16.msra.mxu0 0
        %503 = vmatpush.bf16.msra.mxu0 0
        %504 = vmatpush.bf16.msra.mxu0 0
        %505 = vmatpush.bf16.msra.mxu0 0
        %506 = vmatpush.bf16.msra.mxu0 %v484
        %507 = vmatmul.bf16.gmra.mxu0 %v478
        %v508 = vpop.f32.mrf.mxu0
        %v509 = vadd.f32 0.0, %v508
        %v510 = vpop.f32.mrf.mxu0
        %511 = vdwg.mxu0
        %512 = vrot.lane.b32.xlu0 %v180, 126
        %v513 = vpop.permute.xlu0 %512
        %514 = vrot.lane.b32.xlu0 %v181, 126
        %v515 = vpop.permute.xlu0 %514
        %516 = vrot.lane.b32.xlu0 %v182, 126
        %v517 = vpop.permute.xlu0 %516
        %vm518 = vcmask 1031168
        %v519 = vsel %vm518, %v513, %v515
        %v520 = vsel %vm518, %v515, %v517
        %v522 = vsel %vm192, %v465, 0
        %v525 = vsel %vm196, %v519, 0
        %v528 = vsel %vm196, %v520, 0
        %530 = vmatpush.bf16.msra.mxu0 0
        %531 = vmatpush.bf16.msra.mxu0 0
        %532 = vmatpush.bf16.msra.mxu0 0
        %533 = vmatpush.bf16.msra.mxu0 0
        %534 = vmatpush.bf16.msra.mxu0 0
        %535 = vmatpush.bf16.msra.mxu0 0
        %536 = vmatpush.bf16.msra.mxu0 0
        %537 = vmatpush.bf16.msra.mxu0 %v525
        %538 = vmatmul.bf16.gmra.mxu0 %v522
        %v539 = vpop.f32.mrf.mxu0
        %v540 = vadd.f32 %v496, %v539
        %v541 = vpop.f32.mrf.mxu0
        %542 = vdwg.mxu0
        %543 = vmatpush.bf16.msra.mxu0 0
        %544 = vmatpush.bf16.msra.mxu0 0
        %545 = vmatpush.bf16.msra.mxu0 0
        %546 = vmatpush.bf16.msra.mxu0 0
        %547 = vmatpush.bf16.msra.mxu0 0
        %548 = vmatpush.bf16.msra.mxu0 0
        %549 = vmatpush.bf16.msra.mxu0 0
        %550 = vmatpush.bf16.msra.mxu0 %v528
        %551 = vmatmul.bf16.gmra.mxu0 %v522
        %v552 = vpop.f32.mrf.mxu0
        %v553 = vadd.f32 %v509, %v552
        %v554 = vpop.f32.mrf.mxu0
        %555 = vdwg.mxu0
        %s556 = scalar_lea.vmem %s1, 32
        %v557 = vld [vmem:[%s556] sm:$0xf]
        %558 = vrot.lane.b32.xlu0 %v180, 94
        %v559 = vpop.permute.xlu0 %558
        %560 = vrot.lane.b32.xlu0 %v181, 94
        %v561 = vpop.permute.xlu0 %560
        %562 = vrot.lane.b32.xlu0 %v182, 94
        %v563 = vpop.permute.xlu0 %562
        %vm564 = vcmask 769024
        %v565 = vsel %vm564, %v559, %v561
        %v566 = vsel %vm564, %v561, %v563
        %v568 = vsel %vm192, %v557, 0
        %v571 = vsel %vm196, %v565, 0
        %v574 = vsel %vm196, %v566, 0
        %576 = vmatpush.bf16.msra.mxu0 0
        %577 = vmatpush.bf16.msra.mxu0 0
        %578 = vmatpush.bf16.msra.mxu0 0
        %579 = vmatpush.bf16.msra.mxu0 0
        %580 = vmatpush.bf16.msra.mxu0 0
        %581 = vmatpush.bf16.msra.mxu0 0
        %582 = vmatpush.bf16.msra.mxu0 0
        %583 = vmatpush.bf16.msra.mxu0 %v571
        %584 = vmatmul.bf16.gmra.mxu0 %v568
        %v585 = vpop.f32.mrf.mxu0
        %v586 = vadd.f32 0.0, %v585
        %v587 = vpop.f32.mrf.mxu0
        %588 = vdwg.mxu0
        %589 = vmatpush.bf16.msra.mxu0 0
        %590 = vmatpush.bf16.msra.mxu0 0
        %591 = vmatpush.bf16.msra.mxu0 0
        %592 = vmatpush.bf16.msra.mxu0 0
        %593 = vmatpush.bf16.msra.mxu0 0
        %594 = vmatpush.bf16.msra.mxu0 0
        %595 = vmatpush.bf16.msra.mxu0 0
        %596 = vmatpush.bf16.msra.mxu0 %v574
        %597 = vmatmul.bf16.gmra.mxu0 %v568
        %v598 = vpop.f32.mrf.mxu0
        %v599 = vadd.f32 0.0, %v598
        %v600 = vpop.f32.mrf.mxu0
        %601 = vdwg.mxu0
        %v602 = vadd.f32 %v540, %v586
        %v603 = vadd.f32 %v553, %v599
        %vm604 = vcmp.lt.s32.totalorder %v170, 15
        %vm605 = vcmp.lt.s32.totalorder %v171, 15
        %v606 = vsel %vm604, 1, 0
        %v607 = vsel %vm605, 1, 0
        %vm608 = vcmp.eq.s32.totalorder %v606, 1
        %vm609 = vcmp.eq.s32.totalorder %v607, 1
        %v610 = vsel %vm608, %v602, 0.0
        %v611 = vsel %vm609, %v603, 0.0
        %v612 = vadd.f32 %v462, %v610
        %v613 = vadd.f32 %v463, %v611
        %v614 = vadd.f32 %v612, %v613
        %615 = vadd.xlane.f32.xlu0 %v614
        %v616 = vpop.xlane.xlu0 %615
        %v617 = vmul.f32 %v612, %v612
        %v618 = vmul.f32 %v613, %v613
        %v619 = vadd.f32 %v617, %v618
        %620 = vadd.xlane.f32.xlu0 %v619
        %v621 = vpop.xlane.xlu0 %620
        %v622 = vmul.f32 %v616, 0.00390625
        %v623 = vmul.f32 %v621, 0.00390625
        %v624 = vmul.f32 %v622, %v622
        %v625 = vsub.f32 %v623, %v624
        %v626 = vmax.f32 %v625, 0.0
        %v627 = vsub.f32 %v612, %v622
        %v628 = vsub.f32 %v613, %v622
        %v629 = vadd.f32 %v626, 1e-05
        %v630 = vrsqrt.pop %v629
        %v631 = vmul.f32 %v630, %v629
        %v632 = vmul.f32 %v631, %v630
        %v633 = vmul.f32 0.5, %v632
        %v634 = vsub.f32 1.5, %v633
        %v635 = vmul.f32 %v630, %v634
        %vm636 = vweird.f32 %v629
        %vm637 = vweird.f32 %v630
        %vm638 = vmor %vm636, %vm637
        %v639 = vsel %vm638, %v630, %v635
        %v640 = vmul.f32 %v627, %v639
        %v641 = vmul.f32 %v628, %v639
        %vm642 = vcmp.ge.f32.partialorder %v640, 0.0
        %vm643 = vcmp.ge.f32.partialorder %v641, 0.0
        %v644 = vmul.f32 %v640, 0.01
        %v645 = vmul.f32 %v641, 0.01
        %v646 = vsel %vm642, %v640, %v644
        %v647 = vsel %vm643, %v641, %v645
        %648 = vst [vmem:[%s136] sm:$0xff] %v646
        %649 = vst [vmem:[%s136 + $0x8] sm:$0xff] %v647
        %s650 = sand.u32 %s71, 1
        %s651 = scalar_lea.sflag [#allocation3], %s650
        %s652 = sand.u32 %s71, 1
        %s653 = smul.addr %s652, 16
        %s654 = scalar_lea.vmem [#allocation2], %s653
        // Predicated region
        $region29: #{tpu_custom_call.1} parent=27 // pred_check
          %p655 = pneg %p81
        $region30: #{tpu_custom_call.1} parent=27 // pred_check_branch
          %657 = sbr.rel (%p655) target = $region32
        $region31: #{tpu_custom_call.1} parent=27 // pred_region
          %659 = vsyncadd %s651, 0
          %s660 = smul.addr %s16, 2
          %s661 = smul.addr %s660, 8
          %s662 = scalar_lea.hbm %s2, %s661
          %s664 = sshll.u32 %s654, 4
          %s665 = int_to_ptr.vmem [resolvable:$true] %s664
          %s666 = sshll.u32 %s662, 4
          %s667 = int_to_ptr.hbm [resolvable:$true] %s666
          %669 = dma.vmem_to_hbm [thread:$0]  %s665, 256, %s667, %s651
        $region32: #{tpu_custom_call.1} parent=27 // pred_fallthru
          _
      $region28: #{tpu_custom_call.1} parent=5 // pred_fallthru
        _
      %p670 = scmp.le.s32.totalorder 2, %s11
      // Predicated region
      $region33: #{tpu_custom_call.1} parent=5 // pred_check
        %p671 = pneg %p670
      $region34: #{tpu_custom_call.1} parent=5 // pred_check_branch
        %673 = sbr.rel (%p671) target = $region36
      $region35: #{tpu_custom_call.1} parent=5 // pred_region
        %s674 = ssub.s32 %s11, 2
        // Predicated region
        $region37: #{tpu_custom_call.1} parent=35 // pred_check
          %p675 = pneg %p87
        $region38: #{tpu_custom_call.1} parent=35 // pred_check_branch
          %677 = sbr.rel (%p675) target = $region40
        $region39: #{tpu_custom_call.1} parent=35 // pred_region
          %s678 = sand.u32 %s72, 1
          %s679 = scalar_lea.sflag [#allocation3], %s678
          %s680 = sand.u32 %s72, 1
          %s681 = smul.addr %s680, 16
          %s682 = scalar_lea.vmem [#allocation2], %s681
          %684 = dma.done %s679, 256
        $region40: #{tpu_custom_call.1} parent=35 // pred_fallthru
          _
      $region36: #{tpu_custom_call.1} parent=5 // pred_fallthru
        _
    $region6: #{tpu_custom_call.1} parent=1 // loop_footer
      %s15 = sadd.s32 1, %s11
    $region7: #{tpu_custom_call.1} parent=1 // loop_footer_branch
      %10 = sbr.rel target = $region3
    $region8: #{tpu_custom_call.1} parent=1 // loop_exit
      _
    %685 = vsyncpa [#allocation3], 1
    %s686 = scalar_lea.sflag [#allocation3], 1
    %687 = vsyncpa %s686, 1

</llo_original>
